<compile_context>
chip_gen: v5e
topology: v5e:2x2
jax: 0.10.0
libtpu: 0.0.40
codegen_flags: <defaults>
</compile_context>

<pallas_src>
import functools

import jax
import jax.numpy as jnp
from jax.experimental import pallas as pl
from jax.experimental.pallas import tpu as pltpu

LN_EPS = 1e-5  # PyTorch nn.LayerNorm default


def _critic_kernel(obs_ref, act_ref, wt_ref, w1h_ref, w1a_ref, w12_ref,
                   w22_ref, w13_ref, w23_ref, slab_ref, out_ref, acc_ref,
                   *, feature_dim, hidden_dim):
    F, H = feature_dim, hidden_dim
    k = pl.program_id(1)
    nk = pl.num_programs(1)

    @pl.when(k == 0)
    def _():
        acc_ref[...] = jnp.zeros_like(acc_ref)

    # --- trunk matmul, accumulated over repr_dim tiles (bf16 MXU, f32 accum) ---
    acc_ref[...] += jnp.dot(obs_ref[...], wt_ref[...],
                            preferred_element_type=jnp.float32)

    @pl.when(k == nk - 1)
    def _():
        # small-parameter slab (one DMA for every 1-row parameter, f32)
        bt   = slab_ref[0:1, :F]            # trunk bias
        ln_g = slab_ref[1:2, :F]            # LayerNorm gamma
        ln_b = slab_ref[2:3, :F]            # LayerNorm beta
        b1   = slab_ref[3:4, :2 * H]        # fused [b11 | b21]
        b2a  = slab_ref[4:5, :H]            # b12
        b2b  = slab_ref[4:5, H:2 * H]       # b22
        b3a  = slab_ref[5:6, 0:1]           # b13
        b3b  = slab_ref[5:6, 1:2]           # b23

        # --- LayerNorm (two-pass variance, f32) + Tanh --------------------------
        t = acc_ref[...] + bt
        mu = jnp.mean(t, axis=-1, keepdims=True)
        d = t - mu
        var = jnp.mean(d * d, axis=-1, keepdims=True)
        h = jnp.tanh(d * jax.lax.rsqrt(var + LN_EPS) * ln_g + ln_b)

        # --- both Q heads, layer 1 fused on the MXU (bf16 in, f32 accum) --------
        h16 = h.astype(jnp.bfloat16)
        act = act_ref[...]                   # already bf16
        x = (jnp.dot(h16, w1h_ref[...], preferred_element_type=jnp.float32)
             + jnp.dot(act, w1a_ref[...], preferred_element_type=jnp.float32)
             + b1)
        x = jnp.maximum(x, 0.0)

        # --- layer 2 un-fused: two (TB,H)@(H,H) matmuls --------------------------
        x1 = x[:, :H].astype(jnp.bfloat16)
        x2 = x[:, H:].astype(jnp.bfloat16)
        y1 = jnp.maximum(
            jnp.dot(x1, w12_ref[...], preferred_element_type=jnp.float32) + b2a, 0.0)
        y2 = jnp.maximum(
            jnp.dot(x2, w22_ref[...], preferred_element_type=jnp.float32) + b2b, 0.0)

        # --- layer 3: two tiny (H,1) dots, (TB, 2) output ------------------------
        q1 = jnp.dot(y1.astype(jnp.bfloat16), w13_ref[...],
                     preferred_element_type=jnp.float32) + b3a
        q2 = jnp.dot(y2.astype(jnp.bfloat16), w23_ref[...],
                     preferred_element_type=jnp.float32) + b3b
        out_ref[...] = jnp.concatenate([q1, q2], axis=1)


def _round_up(x, m):
    return (x + m - 1) // m * m


def pack_params(p):
    """Fuse the two Q heads' layer-1 weights, cast weights to bf16, and collapse
    all 1-row parameters into one f32 slab."""
    F = p["wt"].shape[1]
    H = p["w12"].shape[0]
    W = max(F, 2 * H)   # slab width covers both F-wide LN params and 2H-wide biases

    def row(v):
        v = v.reshape(1, -1).astype(jnp.float32)
        return jnp.pad(v, ((0, 0), (0, W - v.shape[1])))

    slab = jnp.concatenate([
        row(p["bt"]), row(p["ln_g"]), row(p["ln_b"]),
        row(jnp.concatenate([p["b11"], p["b21"]], axis=1)),
        row(jnp.concatenate([p["b12"], p["b22"]], axis=1)),
        row(jnp.concatenate([p["b13"], p["b23"]], axis=1)),
        jnp.zeros((2, W), jnp.float32),                    # pad to 8 rows
    ], axis=0)                                             # (8, W)

    bf16 = jnp.bfloat16
    return {
        "wt":  p["wt"].astype(bf16),                                      # (R, F)
        "w1h": jnp.concatenate([p["w11h"], p["w21h"]], 1).astype(bf16),   # (F, 2H)
        "w1a": jnp.concatenate([p["w11a"], p["w21a"]], 1).astype(bf16),   # (A, 2H)
        "w12": p["w12"].astype(bf16), "w22": p["w22"].astype(bf16),       # (H, H)
        "w13": p["w13"].astype(bf16), "w23": p["w23"].astype(bf16),       # (H, 1)
        "slab": slab,
        "feature_dim": F, "hidden_dim": H,
    }


def critic_forward(obs, action, packed, *, batch_tile=None, k_tile=None):
    B, repr_dim = obs.shape
    A = action.shape[1]
    F = packed["feature_dim"]
    H = packed["hidden_dim"]
    W = packed["slab"].shape[1]

    # ---- batch tile: >= 2 grid steps whenever B >= 16 (2nd TensorCore on v7x) ----
    if batch_tile is not None:
        TB = _round_up(batch_tile, 8)
    else:
        TB = min(_round_up(max(B, 1), 8), 128)
        if B >= 16:
            TB = min(TB, max(8, _round_up(pl.cdiv(B, 2), 8)))
    Bp = _round_up(B, TB)

    # ---- repr_dim (reduction) tile ----
    TK_MAX = 1024
    TK = k_tile if k_tile is not None else min(repr_dim, TK_MAX)
    if TK >= repr_dim:
        TK, Kp = repr_dim, repr_dim
    else:
        TK = _round_up(TK, 128)              # non-full last dim must be 128-aligned
        Kp = _round_up(repr_dim, TK)
    nk = Kp // TK

    wt = packed["wt"]
    if Bp != B or Kp != repr_dim:
        obs = jnp.pad(obs, ((0, Bp - B), (0, Kp - repr_dim)))
    if Bp != B:
        action = jnp.pad(action, ((0, Bp - B), (0, 0)))
    if Kp != repr_dim:
        # TODO(synk): pre-pad wt in pack_params once the production k_tile is fixed.
        wt = jnp.pad(wt, ((0, Kp - repr_dim), (0, 0)))

    obs = obs.astype(jnp.bfloat16)
    action = action.astype(jnp.bfloat16)

    obs_map = lambda i, k: (i, k)
    row_map = lambda i, k: (i, 0)
    wt_map = lambda i, k: (k, 0)
    res_map = lambda i, k: (0, 0)

    def resident(shape):
        # Weights with a constant index_map are DMA'd once; single-buffer them so
        # the default second pipeline buffer does not waste VMEM.
        if hasattr(pl, "Buffered"):
            try:
                return pl.BlockSpec(shape, res_map, pipeline_mode=pl.Buffered(1))
            except TypeError:
                pass
        return pl.BlockSpec(shape, res_map)

    grid = (Bp // TB, nk)

    out = pl.pallas_call(
        functools.partial(_critic_kernel, feature_dim=F, hidden_dim=H),
        out_shape=jax.ShapeDtypeStruct((Bp, 2), jnp.float32),
        grid=grid,
        in_specs=[
            pl.BlockSpec((TB, TK), obs_map),     # obs (bf16, pipelined over B and K)
            pl.BlockSpec((TB, A), row_map),      # action (bf16)
            pl.BlockSpec((TK, F), wt_map),       # trunk weight (bf16, K-tiled)
            resident((F, 2 * H)),                # fused head L1, h part
            resident((A, 2 * H)),                # fused head L1, action part
            resident((H, H)),                    # Q1 layer-2 weight
            resident((H, H)),                    # Q2 layer-2 weight
            resident((H, 1)),                    # Q1 layer-3 weight
            resident((H, 1)),                    # Q2 layer-3 weight
            resident((8, W)),                    # bias / LayerNorm slab (f32)
        ],
        out_specs=pl.BlockSpec((TB, 2), row_map),
        scratch_shapes=[pltpu.VMEM((TB, F), jnp.float32)],   # trunk accumulator
        compiler_params=pltpu.CompilerParams(
            dimension_semantics=("parallel", "arbitrary"),
            vmem_limit_bytes=48 * 1024 * 1024),
    )(obs, action, wt, packed["w1h"], packed["w1a"], packed["w12"],
      packed["w22"], packed["w13"], packed["w23"], packed["slab"])

    q12 = out[:B]
    return q12[:, 0:1], q12[:, 1:2]


def init_params(key, repr_dim, action_dim, feature_dim, hidden_dim):
    """Deterministic synthetic init (weights stored as (in, out))."""
    ks = jax.random.split(key, 16)

    def w(k, shape, scale=0.1):
        return scale * jax.random.normal(k, shape, dtype=jnp.float32)

    in_q = feature_dim + action_dim
    p = {
        "wt": w(ks[0], (repr_dim, feature_dim)),
        "bt": w(ks[1], (1, feature_dim)),
        "ln_g": jnp.ones((1, feature_dim), jnp.float32),
        "ln_b": jnp.zeros((1, feature_dim), jnp.float32),
    }
    # Q1
    w1_full = w(ks[2], (in_q, hidden_dim))
    p["w11h"], p["w11a"] = w1_full[:feature_dim], w1_full[feature_dim:]
    p["b11"] = w(ks[3], (1, hidden_dim))
    p["w12"] = w(ks[4], (hidden_dim, hidden_dim))
    p["b12"] = w(ks[5], (1, hidden_dim))
    p["w13"] = w(ks[6], (hidden_dim, 1))
    p["b13"] = w(ks[7], (1, 1))
    # Q2
    w2_full = w(ks[8], (in_q, hidden_dim))
    p["w21h"], p["w21a"] = w2_full[:feature_dim], w2_full[feature_dim:]
    p["b21"] = w(ks[9], (1, hidden_dim))
    p["w22"] = w(ks[10], (hidden_dim, hidden_dim))
    p["b22"] = w(ks[11], (1, hidden_dim))
    p["w23"] = w(ks[12], (hidden_dim, 1))
    p["b23"] = w(ks[13], (1, 1))
    return p


def critic_reference(obs, action, p):
    """Pure-JAX reference mirroring the kernel's bf16 matmul inputs / f32 accum."""
    bf = lambda a: a.astype(jnp.bfloat16)
    f32 = jnp.float32

    t = jnp.dot(bf(obs), bf(p["wt"]), preferred_element_type=f32) + p["bt"]
    mu = t.mean(-1, keepdims=True)
    d = t - mu
    var = (d * d).mean(-1, keepdims=True)
    h = jnp.tanh(d * jax.lax.rsqrt(var + LN_EPS) * p["ln_g"] + p["ln_b"])

    def head(w1h, w1a, b1, w2, b2, w3, b3):
        x = (jnp.dot(bf(h), bf(w1h), preferred_element_type=f32)
             + jnp.dot(bf(action), bf(w1a), preferred_element_type=f32) + b1)
        x = jnp.maximum(x, 0.0)
        x = jnp.dot(bf(x), bf(w2), preferred_element_type=f32) + b2
        x = jnp.maximum(x, 0.0)
        return jnp.dot(bf(x), bf(w3), preferred_element_type=f32) + b3

    q1 = head(p["w11h"], p["w11a"], p["b11"], p["w12"], p["b12"], p["w13"], p["b13"])
    q2 = head(p["w21h"], p["w21a"], p["b21"], p["w22"], p["b22"], p["w23"], p["b23"])
    return q1, q2


if __name__ == "__main__":
    # Small shapes chosen to exercise batch tiling (2 tiles + padding) and the
    # repr_dim reduction axis (2 K-steps + padding).
    B, repr_dim, action_dim, feature_dim, hidden_dim = 24, 200, 4, 32, 32

    key = jax.random.PRNGKey(0)
    k_obs, k_act, k_par = jax.random.split(key, 3)
    obs = jax.random.normal(k_obs, (B, repr_dim), dtype=jnp.float32)
    action = jax.random.uniform(k_act, (B, action_dim), dtype=jnp.float32,
                                minval=-1.0, maxval=1.0)
    params = init_params(k_par, repr_dim, action_dim, feature_dim, hidden_dim)
    packed = pack_params(params)

    q1, q2 = critic_forward(obs, action, packed, k_tile=128)
    jax.block_until_ready((q1, q2))

    q1_ref, q2_ref = critic_reference(obs, action, params)
    assert q1.shape == (B, 1) and q2.shape == (B, 1)
    assert jnp.allclose(q1, q1_ref, atol=2e-3, rtol=2e-3), \
        float(jnp.max(jnp.abs(q1 - q1_ref)))
    assert jnp.allclose(q2, q2_ref, atol=2e-3, rtol=2e-3), \
        float(jnp.max(jnp.abs(q2 - q2_ref)))

    print("KERNEL_OK")
</pallas_src>

<mosaic_0001>
module attributes {stable_mosaic.version = 11 : i64} {
  func.func @_critic_kernel(%arg0: i32, %arg1: i32, %arg2: memref<16x128xbf16, #tpu.memory_space<vmem>>, %arg3: memref<16x4xbf16, #tpu.memory_space<vmem>>, %arg4: memref<128x32xbf16, #tpu.memory_space<vmem>>, %arg5: memref<32x64xbf16, #tpu.memory_space<vmem>>, %arg6: memref<4x64xbf16, #tpu.memory_space<vmem>>, %arg7: memref<32x32xbf16, #tpu.memory_space<vmem>>, %arg8: memref<32x32xbf16, #tpu.memory_space<vmem>>, %arg9: memref<32x1xbf16, #tpu.memory_space<vmem>>, %arg10: memref<32x1xbf16, #tpu.memory_space<vmem>>, %arg11: memref<8x64xf32, #tpu.memory_space<vmem>>, %arg12: memref<16x2xf32, #tpu.memory_space<vmem>>, %arg13: memref<16x32xf32, #tpu.memory_space<vmem>>) attributes {dimension_semantics = [#tpu.dimension_semantics<parallel>, #tpu.dimension_semantics<arbitrary>], iteration_bounds = array<i64: 2, 2>, scalar_prefetch = 0 : i64, scratch_operands = 1 : i64, tpu.core_type = #tpu.core_type<tc>, window_params = [{transform_indices = @transform_0, window_bounds = array<i64: 16, 128>}, {transform_indices = @transform_1, window_bounds = array<i64: 16, 4>}, {transform_indices = @transform_2, window_bounds = array<i64: 128, 32>}, {pipeline_mode = #tpu.pipeline_mode<synchronous>, transform_indices = @transform_3, window_bounds = array<i64: 32, 64>}, {pipeline_mode = #tpu.pipeline_mode<synchronous>, transform_indices = @transform_4, window_bounds = array<i64: 4, 64>}, {pipeline_mode = #tpu.pipeline_mode<synchronous>, transform_indices = @transform_5, window_bounds = array<i64: 32, 32>}, {pipeline_mode = #tpu.pipeline_mode<synchronous>, transform_indices = @transform_6, window_bounds = array<i64: 32, 32>}, {pipeline_mode = #tpu.pipeline_mode<synchronous>, transform_indices = @transform_7, window_bounds = array<i64: 32, 1>}, {pipeline_mode = #tpu.pipeline_mode<synchronous>, transform_indices = @transform_8, window_bounds = array<i64: 32, 1>}, {pipeline_mode = #tpu.pipeline_mode<synchronous>, transform_indices = @transform_9, window_bounds = array<i64: 8, 64>}, {transform_indices = @transform_10, window_bounds = array<i64: 16, 2>}]} {
    %c0_i32 = arith.constant 0 : i32
    %0 = arith.cmpi eq, %arg1, %c0_i32 : i32
    %1 = arith.extui %0 : i1 to i32
    %c0_i32_0 = arith.constant 0 : i32
    %2 = arith.cmpi ne, %1, %c0_i32_0 : i32
    scf.if %2 {
      %cst_9 = arith.constant 0.000000e+00 : f32
      %12 = vector.broadcast %cst_9 : f32 to vector<16x32xf32>
      %c0_10 = arith.constant 0 : index
      %c0_11 = arith.constant 0 : index
      %13 = vector.load %arg13[%c0_10, %c0_11] : memref<16x32xf32, #tpu.memory_space<vmem>>, vector<16x32xf32>
      tpu.vector_store %arg13[%c0_10, %c0_11], %12 {strides = array<i32>} : memref<16x32xf32, #tpu.memory_space<vmem>>, vector<16x32xf32>,
    } else {
    }
    %c0 = arith.constant 0 : index
    %c0_1 = arith.constant 0 : index
    %3 = vector.load %arg13[%c0, %c0_1] : memref<16x32xf32, #tpu.memory_space<vmem>>, vector<16x32xf32>
    %c0_2 = arith.constant 0 : index
    %c0_3 = arith.constant 0 : index
    %4 = vector.load %arg2[%c0_2, %c0_3] : memref<16x128xbf16, #tpu.memory_space<vmem>>, vector<16x128xbf16>
    %c0_4 = arith.constant 0 : index
    %c0_5 = arith.constant 0 : index
    %5 = vector.load %arg4[%c0_4, %c0_5] : memref<128x32xbf16, #tpu.memory_space<vmem>>, vector<128x32xbf16>
    %cst = arith.constant dense<0.000000e+00> : vector<16x32xf32>
    %6 = tpu.matmul %4, %5, %cst {dimension_numbers = #tpu.dot_dimension_numbers<[1], [0], [0], [1], [0, 0, 1, 1], [], []>} : vector<16x128xbf16>, vector<128x32xbf16>, vector<16x32xf32> -> vector<16x32xf32>
    %7 = arith.addf %3, %6 : vector<16x32xf32>
    %c0_6 = arith.constant 0 : index
    %c0_7 = arith.constant 0 : index
    %8 = vector.load %arg13[%c0_6, %c0_7] : memref<16x32xf32, #tpu.memory_space<vmem>>, vector<16x32xf32>
    tpu.vector_store %arg13[%c0_6, %c0_7], %7 {strides = array<i32>} : memref<16x32xf32, #tpu.memory_space<vmem>>, vector<16x32xf32>,
    %c1_i32 = arith.constant 1 : i32
    %9 = arith.cmpi eq, %arg1, %c1_i32 : i32
    %10 = arith.extui %9 : i1 to i32
    %c0_i32_8 = arith.constant 0 : i32
    %11 = arith.cmpi ne, %10, %c0_i32_8 : i32
    scf.if %11 {
      %c0_9 = arith.constant 0 : index
      %c0_10 = arith.constant 0 : index
      %12 = vector.load %arg11[%c0_9, %c0_10] : memref<8x64xf32, #tpu.memory_space<vmem>>, vector<1x32xf32>
      %c1 = arith.constant 1 : index
      %c0_11 = arith.constant 0 : index
      %13 = vector.load %arg11[%c1, %c0_11] : memref<8x64xf32, #tpu.memory_space<vmem>>, vector<1x32xf32>
      %c2 = arith.constant 2 : index
      %c0_12 = arith.constant 0 : index
      %14 = vector.load %arg11[%c2, %c0_12] : memref<8x64xf32, #tpu.memory_space<vmem>>, vector<1x32xf32>
      %c3 = arith.constant 3 : index
      %c0_13 = arith.constant 0 : index
      %15 = vector.load %arg11[%c3, %c0_13] : memref<8x64xf32, #tpu.memory_space<vmem>>, vector<1x64xf32>
      %c4 = arith.constant 4 : index
      %c0_14 = arith.constant 0 : index
      %16 = vector.load %arg11[%c4, %c0_14] : memref<8x64xf32, #tpu.memory_space<vmem>>, vector<1x32xf32>
      %c4_15 = arith.constant 4 : index
      %c32 = arith.constant 32 : index
      %17 = vector.load %arg11[%c4_15, %c32] : memref<8x64xf32, #tpu.memory_space<vmem>>, vector<1x32xf32>
      %c5 = arith.constant 5 : index
      %c0_16 = arith.constant 0 : index
      %18 = vector.load %arg11[%c5, %c0_16] : memref<8x64xf32, #tpu.memory_space<vmem>>, vector<1x1xf32>
      %c5_17 = arith.constant 5 : index
      %c1_18 = arith.constant 1 : index
      %19 = vector.load %arg11[%c5_17, %c1_18] : memref<8x64xf32, #tpu.memory_space<vmem>>, vector<1x1xf32>
      %c0_19 = arith.constant 0 : index
      %c0_20 = arith.constant 0 : index
      %20 = vector.load %arg13[%c0_19, %c0_20] : memref<16x32xf32, #tpu.memory_space<vmem>>, vector<16x32xf32>
      %21 = vector.broadcast %12 : vector<1x32xf32> to vector<16x32xf32>
      %22 = arith.addf %20, %21 : vector<16x32xf32>
      %cst_21 = arith.constant dense<0.000000e+00> : vector<16xf32>
      %23 = vector.multi_reduction <add>, %22, %cst_21 [1] : vector<16x32xf32> to vector<16xf32>
      %24 = vector.shape_cast %23 : vector<16xf32> to vector<16x1xf32>
      %cst_22 = arith.constant 3.200000e+01 : f32
      %25 = vector.broadcast %cst_22 : f32 to vector<16x1xf32>
      %26 = arith.divf %24, %25 : vector<16x1xf32>
      %27 = vector.broadcast %26 : vector<16x1xf32> to vector<16x32xf32>
      %28 = arith.subf %22, %27 : vector<16x32xf32>
      %29 = arith.mulf %28, %28 : vector<16x32xf32>
      %cst_23 = arith.constant dense<0.000000e+00> : vector<16xf32>
      %30 = vector.multi_reduction <add>, %29, %cst_23 [1] : vector<16x32xf32> to vector<16xf32>
      %31 = vector.shape_cast %30 : vector<16xf32> to vector<16x1xf32>
      %cst_24 = arith.constant 3.200000e+01 : f32
      %32 = vector.broadcast %cst_24 : f32 to vector<16x1xf32>
      %33 = arith.divf %31, %32 : vector<16x1xf32>
      %cst_25 = arith.constant 9.99999974E-6 : f32
      %34 = vector.broadcast %cst_25 : f32 to vector<16x1xf32>
      %35 = arith.addf %33, %34 : vector<16x1xf32>
      %36 = math.rsqrt %35 : vector<16x1xf32>
      %37 = vector.broadcast %36 : vector<16x1xf32> to vector<16x32xf32>
      %38 = arith.mulf %28, %37 : vector<16x32xf32>
      %39 = vector.broadcast %13 : vector<1x32xf32> to vector<16x32xf32>
      %40 = arith.mulf %38, %39 : vector<16x32xf32>
      %41 = vector.broadcast %14 : vector<1x32xf32> to vector<16x32xf32>
      %42 = arith.addf %40, %41 : vector<16x32xf32>
      %43 = math.tanh %42 : vector<16x32xf32>
      %44 = arith.truncf %43 : vector<16x32xf32> to vector<16x32xbf16>
      %c0_26 = arith.constant 0 : index
      %c0_27 = arith.constant 0 : index
      %45 = vector.load %arg3[%c0_26, %c0_27] : memref<16x4xbf16, #tpu.memory_space<vmem>>, vector<16x4xbf16>
      %c0_28 = arith.constant 0 : index
      %c0_29 = arith.constant 0 : index
      %46 = vector.load %arg5[%c0_28, %c0_29] : memref<32x64xbf16, #tpu.memory_space<vmem>>, vector<32x64xbf16>
      %cst_30 = arith.constant dense<0.000000e+00> : vector<16x64xf32>
      %47 = tpu.matmul %44, %46, %cst_30 {dimension_numbers = #tpu.dot_dimension_numbers<[1], [0], [0], [1], [0, 0, 1, 1], [], []>} : vector<16x32xbf16>, vector<32x64xbf16>, vector<16x64xf32> -> vector<16x64xf32>
      %c0_31 = arith.constant 0 : index
      %c0_32 = arith.constant 0 : index
      %48 = vector.load %arg6[%c0_31, %c0_32] : memref<4x64xbf16, #tpu.memory_space<vmem>>, vector<4x64xbf16>
      %cst_33 = arith.constant dense<0.000000e+00> : vector<16x64xf32>
      %49 = tpu.matmul %45, %48, %cst_33 {dimension_numbers = #tpu.dot_dimension_numbers<[1], [0], [0], [1], [0, 0, 1, 1], [], []>} : vector<16x4xbf16>, vector<4x64xbf16>, vector<16x64xf32> -> vector<16x64xf32>
      %50 = arith.addf %47, %49 : vector<16x64xf32>
      %51 = vector.broadcast %15 : vector<1x64xf32> to vector<16x64xf32>
      %52 = arith.addf %50, %51 : vector<16x64xf32>
      %cst_34 = arith.constant 0.000000e+00 : f32
      %53 = vector.broadcast %cst_34 : f32 to vector<16x64xf32>
      %54 = arith.maximumf %52, %53 : vector<16x64xf32>
      %55 = vector.extract_strided_slice %54 {offsets = [0, 0], sizes = [16, 32], strides = [1, 1]} : vector<16x64xf32> to vector<16x32xf32>
      %56 = arith.truncf %55 : vector<16x32xf32> to vector<16x32xbf16>
      %57 = vector.extract_strided_slice %54 {offsets = [0, 32], sizes = [16, 32], strides = [1, 1]} : vector<16x64xf32> to vector<16x32xf32>
      %58 = arith.truncf %57 : vector<16x32xf32> to vector<16x32xbf16>
      %c0_35 = arith.constant 0 : index
      %c0_36 = arith.constant 0 : index
      %59 = vector.load %arg7[%c0_35, %c0_36] : memref<32x32xbf16, #tpu.memory_space<vmem>>, vector<32x32xbf16>
      %cst_37 = arith.constant dense<0.000000e+00> : vector<16x32xf32>
      %60 = tpu.matmul %56, %59, %cst_37 {dimension_numbers = #tpu.dot_dimension_numbers<[1], [0], [0], [1], [0, 0, 1, 1], [], []>} : vector<16x32xbf16>, vector<32x32xbf16>, vector<16x32xf32> -> vector<16x32xf32>
      %61 = vector.broadcast %16 : vector<1x32xf32> to vector<16x32xf32>
      %62 = arith.addf %60, %61 : vector<16x32xf32>
      %cst_38 = arith.constant 0.000000e+00 : f32
      %63 = vector.broadcast %cst_38 : f32 to vector<16x32xf32>
      %64 = arith.maximumf %62, %63 : vector<16x32xf32>
      %c0_39 = arith.constant 0 : index
      %c0_40 = arith.constant 0 : index
      %65 = vector.load %arg8[%c0_39, %c0_40] : memref<32x32xbf16, #tpu.memory_space<vmem>>, vector<32x32xbf16>
      %cst_41 = arith.constant dense<0.000000e+00> : vector<16x32xf32>
      %66 = tpu.matmul %58, %65, %cst_41 {dimension_numbers = #tpu.dot_dimension_numbers<[1], [0], [0], [1], [0, 0, 1, 1], [], []>} : vector<16x32xbf16>, vector<32x32xbf16>, vector<16x32xf32> -> vector<16x32xf32>
      %67 = vector.broadcast %17 : vector<1x32xf32> to vector<16x32xf32>
      %68 = arith.addf %66, %67 : vector<16x32xf32>
      %cst_42 = arith.constant 0.000000e+00 : f32
      %69 = vector.broadcast %cst_42 : f32 to vector<16x32xf32>
      %70 = arith.maximumf %68, %69 : vector<16x32xf32>
      %71 = arith.truncf %64 : vector<16x32xf32> to vector<16x32xbf16>
      %c0_43 = arith.constant 0 : index
      %c0_44 = arith.constant 0 : index
      %72 = vector.load %arg9[%c0_43, %c0_44] : memref<32x1xbf16, #tpu.memory_space<vmem>>, vector<32x1xbf16>
      %cst_45 = arith.constant dense<0.000000e+00> : vector<16x1xf32>
      %73 = tpu.matmul %71, %72, %cst_45 {dimension_numbers = #tpu.dot_dimension_numbers<[1], [0], [0], [1], [0, 0, 1, 1], [], []>} : vector<16x32xbf16>, vector<32x1xbf16>, vector<16x1xf32> -> vector<16x1xf32>
      %74 = vector.broadcast %18 : vector<1x1xf32> to vector<16x1xf32>
      %75 = arith.addf %73, %74 : vector<16x1xf32>
      %76 = arith.truncf %70 : vector<16x32xf32> to vector<16x32xbf16>
      %c0_46 = arith.constant 0 : index
      %c0_47 = arith.constant 0 : index
      %77 = vector.load %arg10[%c0_46, %c0_47] : memref<32x1xbf16, #tpu.memory_space<vmem>>, vector<32x1xbf16>
      %cst_48 = arith.constant dense<0.000000e+00> : vector<16x1xf32>
      %78 = tpu.matmul %76, %77, %cst_48 {dimension_numbers = #tpu.dot_dimension_numbers<[1], [0], [0], [1], [0, 0, 1, 1], [], []>} : vector<16x32xbf16>, vector<32x1xbf16>, vector<16x1xf32> -> vector<16x1xf32>
      %79 = vector.broadcast %19 : vector<1x1xf32> to vector<16x1xf32>
      %80 = arith.addf %78, %79 : vector<16x1xf32>
      %81 = tpu.concatenate %75, %80 in 1 : vector<16x1xf32>, vector<16x1xf32> -> vector<16x2xf32>
      %c0_49 = arith.constant 0 : index
      %c0_50 = arith.constant 0 : index
      %82 = vector.load %arg12[%c0_49, %c0_50] : memref<16x2xf32, #tpu.memory_space<vmem>>, vector<16x2xf32>
      tpu.vector_store %arg12[%c0_49, %c0_50], %81 {strides = array<i32>} : memref<16x2xf32, #tpu.memory_space<vmem>>, vector<16x2xf32>,
    } else {
    }
    return
  }
  func.func @transform_0(%arg0: i32, %arg1: i32) -> (i32, i32) {
    %c0_i32 = arith.constant 0 : i32
    return %arg0, %arg1 : i32, i32
  }
  func.func @transform_1(%arg0: i32, %arg1: i32) -> (i32, i32) {
    %c0_i32 = arith.constant 0 : i32
    %c0_i32_0 = arith.constant 0 : i32
    return %arg0, %c0_i32 : i32, i32
  }
  func.func @transform_2(%arg0: i32, %arg1: i32) -> (i32, i32) {
    %c0_i32 = arith.constant 0 : i32
    %c0_i32_0 = arith.constant 0 : i32
    return %arg1, %c0_i32 : i32, i32
  }
  func.func @transform_3(%arg0: i32, %arg1: i32) -> (i32, i32) {
    %c0_i32 = arith.constant 0 : i32
    %c0_i32_0 = arith.constant 0 : i32
    %c0_i32_1 = arith.constant 0 : i32
    return %c0_i32, %c0_i32_0 : i32, i32
  }
  func.func @transform_4(%arg0: i32, %arg1: i32) -> (i32, i32) {
    %c0_i32 = arith.constant 0 : i32
    %c0_i32_0 = arith.constant 0 : i32
    %c0_i32_1 = arith.constant 0 : i32
    return %c0_i32, %c0_i32_0 : i32, i32
  }
  func.func @transform_5(%arg0: i32, %arg1: i32) -> (i32, i32) {
    %c0_i32 = arith.constant 0 : i32
    %c0_i32_0 = arith.constant 0 : i32
    %c0_i32_1 = arith.constant 0 : i32
    return %c0_i32, %c0_i32_0 : i32, i32
  }
  func.func @transform_6(%arg0: i32, %arg1: i32) -> (i32, i32) {
    %c0_i32 = arith.constant 0 : i32
    %c0_i32_0 = arith.constant 0 : i32
    %c0_i32_1 = arith.constant 0 : i32
    return %c0_i32, %c0_i32_0 : i32, i32
  }
  func.func @transform_7(%arg0: i32, %arg1: i32) -> (i32, i32) {
    %c0_i32 = arith.constant 0 : i32
    %c0_i32_0 = arith.constant 0 : i32
    %c0_i32_1 = arith.constant 0 : i32
    return %c0_i32, %c0_i32_0 : i32, i32
  }
  func.func @transform_8(%arg0: i32, %arg1: i32) -> (i32, i32) {
    %c0_i32 = arith.constant 0 : i32
    %c0_i32_0 = arith.constant 0 : i32
    %c0_i32_1 = arith.constant 0 : i32
    return %c0_i32, %c0_i32_0 : i32, i32
  }
  func.func @transform_9(%arg0: i32, %arg1: i32) -> (i32, i32) {
    %c0_i32 = arith.constant 0 : i32
    %c0_i32_0 = arith.constant 0 : i32
    %c0_i32_1 = arith.constant 0 : i32
    return %c0_i32, %c0_i32_0 : i32, i32
  }
  func.func @transform_10(%arg0: i32, %arg1: i32) -> (i32, i32) {
    %c0_i32 = arith.constant 0 : i32
    %c0_i32_0 = arith.constant 0 : i32
    return %arg0, %c0_i32 : i32, i32
  }
}

</mosaic_0001>

<llo_original>
// kernel: tpu_custom_call.1
$region0: #{tpu_custom_call.1}
  #allocation0 [shape = 'u32[]', space=smem, size = 0x4, offset = 0x4, fixed_abs, tag = 'smem constant byte address 0x4 - core index']
  #allocation1 [shape = 'u32[72,128]{1,0:T(1,128)}', space=vmem, size = 0x9000, scoped, tag = 'internal scratch']
  #allocation2 [shape = 'f32[16,32]{1,0:T(8,128)}', space=vmem, size = 0x2000, scoped, tag = 'scratch operand']
  %s0 = inlined_call_operand.vmem [shape: bf16[32,256], index: 0, kind: input, shape index: {}]
  %s1 = inlined_call_operand.vmem [shape: bf16[32,4], index: 1, kind: input, shape index: {}]
  %s2 = inlined_call_operand.vmem [shape: bf16[256,32], index: 2, kind: input, shape index: {}]
  %s3 = inlined_call_operand.vmem [shape: bf16[32,64], index: 3, kind: input, shape index: {}]
  %s4 = inlined_call_operand.vmem [shape: bf16[4,64], index: 4, kind: input, shape index: {}]
  %s5 = inlined_call_operand.vmem [shape: bf16[32,32], index: 5, kind: input, shape index: {}]
  %s6 = inlined_call_operand.vmem [shape: bf16[32,32], index: 6, kind: input, shape index: {}]
  %s7 = inlined_call_operand.vmem [shape: bf16[32,1], index: 7, kind: input, shape index: {}]
  %s8 = inlined_call_operand.vmem [shape: bf16[32,1], index: 8, kind: input, shape index: {}]
  %s9 = inlined_call_operand.vmem [shape: f32[8,64], index: 9, kind: input, shape index: {}]
  %s10 = inlined_call_operand.vmem [shape: f32[32,2], index: 10, kind: output, shape index: {}]
  %s11 = sld [smem:[#allocation0]]
  $region122: #{tpu_custom_call.1} parent=0
    _
  %s13 = ssub.s32 1, %s11
  %s14 = scalar_select 0, %s13, %s11
  $region1: #{tpu_custom_call.1} parent=0
    #allocation3 [shape = 'u8[8192]{0}', space=vmem, size = 0x2000, scoped, tag = 'input window, operand 0']
    loop: start=0, step=1, limit=6
    $region2: #{tpu_custom_call.1} parent=1 // loop_pre_header
      _
    $region3: #{tpu_custom_call.1} parent=1 // loop_header
      %s16 = sphi 0, %s20
      %p17 = scmp.ge.s32.totalorder %s16, 6
      %s23 = sphi 0, %s35
      %s24 = sphi 0, %s31
      %s25 = sphi 0, %s23
      %s26 = sphi 0, %s24
      %s27 = sphi 0, %s25
      %s28 = sphi 0, %s26
      %s40 = sphi 0, %s42
      %s43 = sphi 0, %s40
      %s44 = sphi 0, %s43
      %s60 = sphi 0, %s44
      %s66 = sphi 0, %s68
      %s69 = sphi 0, %s66
      %s70 = sphi 0, %s69
      %s86 = sphi 0, %s70
      %s92 = sphi 0, %s94
      %s95 = sphi 0, %s92
      %s96 = sphi 0, %s95
      %s112 = sphi 0, %s96
      %s116 = sphi 0, %s116
      %s118 = sphi 0, %s116
      %s119 = sphi 0, %s118
      %s133 = sphi 0, %s119
      %s137 = sphi 0, %s137
      %s139 = sphi 0, %s137
      %s140 = sphi 0, %s139
      %s154 = sphi 0, %s140
      %s158 = sphi 0, %s158
      %s160 = sphi 0, %s158
      %s161 = sphi 0, %s160
      %s175 = sphi 0, %s161
      %s179 = sphi 0, %s179
      %s181 = sphi 0, %s179
      %s182 = sphi 0, %s181
      %s196 = sphi 0, %s182
      %s200 = sphi 0, %s200
      %s202 = sphi 0, %s200
      %s203 = sphi 0, %s202
      %s217 = sphi 0, %s203
      %s221 = sphi 0, %s221
      %s223 = sphi 0, %s221
      %s224 = sphi 0, %s223
      %s238 = sphi 0, %s224
      %s242 = sphi 0, %s242
      %s244 = sphi 0, %s242
      %s245 = sphi 0, %s244
      %s259 = sphi 0, %s245
      %s265 = sphi 0, %s267
      %s268 = sphi 0, %s265
      %s269 = sphi 0, %s268
      %s285 = sphi 0, %s269
    $region4: #{tpu_custom_call.1} parent=1 // loop_header_branch
      %19 = sbr.rel (%p17) target = $region8
    $region5: #{tpu_custom_call.1} parent=1 // loop_body
      %s21 = ssub.s32 %s16, 1
      %s22 = ssub.s32 %s16, 2
      %s29 = sadd.s32 1, %s24
      %p30 = scmp.ge.s32.totalorder %s29, 2
      %s31 = scalar_select %p30, 0, %s29
      %s32 = sadd.s32 1, %s23
      %s33 = scalar_select %p30, %s32, %s23
      %p34 = scmp.ge.s32.totalorder %s33, 2
      %s35 = scalar_select %p34, 0, %s33
      %s36 = ssub.s32 %s23, %s35
      %s37 = ssub.s32 %s24, %s31
      %s38 = sor.u32 %s36, %s37
      %p39 = scmp.eq.s32.totalorder %s38, 0
      %s41 = sadd.s32 %s40, 1
      %s42 = scalar_select %p39, %s40, %s41
      %p45 = pneg %p39
      %p46 = scmp.eq.s32.totalorder %s16, 3
      %p47 = por %p45, %p46
      %p48 = scmp.ne.s32.totalorder %s40, %s43
      %p49 = scmp.eq.s32.totalorder %s16, 0
      %p50 = por %p48, %p49
      %p51 = scmp.ne.s32.totalorder %s40, %s43
      %p52 = scmp.eq.s32.totalorder %s21, 3
      %p53 = por %p51, %p52
      %p54 = scmp.ne.s32.totalorder %s43, %s44
      %p55 = scmp.eq.s32.totalorder %s21, 0
      %p56 = por %p54, %p55
      %p57 = scmp.ne.s32.totalorder %s43, %s44
      %p58 = scmp.eq.s32.totalorder %s22, 3
      %p59 = por %p57, %p58
      %p61 = scmp.ne.s32.totalorder %s44, %s60
      %p62 = scmp.eq.s32.totalorder %s22, 0
      %p63 = por %p61, %p62
      %s64 = ssub.s32 %s23, %s35
      %p65 = scmp.eq.s32.totalorder %s64, 0
      %s67 = sadd.s32 %s66, 1
      %s68 = scalar_select %p65, %s66, %s67
      %p71 = pneg %p65
      %p72 = scmp.eq.s32.totalorder %s16, 3
      %p73 = por %p71, %p72
      %p74 = scmp.ne.s32.totalorder %s66, %s69
      %p75 = scmp.eq.s32.totalorder %s16, 0
      %p76 = por %p74, %p75
      %p77 = scmp.ne.s32.totalorder %s66, %s69
      %p78 = scmp.eq.s32.totalorder %s21, 3
      %p79 = por %p77, %p78
      %p80 = scmp.ne.s32.totalorder %s69, %s70
      %p81 = scmp.eq.s32.totalorder %s21, 0
      %p82 = por %p80, %p81
      %p83 = scmp.ne.s32.totalorder %s69, %s70
      %p84 = scmp.eq.s32.totalorder %s22, 3
      %p85 = por %p83, %p84
      %p87 = scmp.ne.s32.totalorder %s70, %s86
      %p88 = scmp.eq.s32.totalorder %s22, 0
      %p89 = por %p87, %p88
      %s90 = ssub.s32 %s24, %s31
      %p91 = scmp.eq.s32.totalorder %s90, 0
      %s93 = sadd.s32 %s92, 1
      %s94 = scalar_select %p91, %s92, %s93
      %p97 = pneg %p91
      %p98 = scmp.eq.s32.totalorder %s16, 3
      %p99 = por %p97, %p98
      %p100 = scmp.ne.s32.totalorder %s92, %s95
      %p101 = scmp.eq.s32.totalorder %s16, 0
      %p102 = por %p100, %p101
      %p103 = scmp.ne.s32.totalorder %s92, %s95
      %p104 = scmp.eq.s32.totalorder %s21, 3
      %p105 = por %p103, %p104
      %p106 = scmp.ne.s32.totalorder %s95, %s96
      %p107 = scmp.eq.s32.totalorder %s21, 0
      %p108 = por %p106, %p107
      %p109 = scmp.ne.s32.totalorder %s95, %s96
      %p110 = scmp.eq.s32.totalorder %s22, 3
      %p111 = por %p109, %p110
      %p113 = scmp.ne.s32.totalorder %s96, %s112
      %p114 = scmp.eq.s32.totalorder %s22, 0
      %p115 = por %p113, %p114
      %s117 = sadd.s32 %s116, 1
      %p120 = scmp.eq.s32.totalorder %s16, 3
      %p121 = scmp.ne.s32.totalorder %s116, %s118
      %p122 = scmp.eq.s32.totalorder %s16, 0
      %p123 = por %p121, %p122
      %p124 = scmp.ne.s32.totalorder %s116, %s118
      %p125 = scmp.eq.s32.totalorder %s21, 3
      %p126 = por %p124, %p125
      %p127 = scmp.ne.s32.totalorder %s118, %s119
      %p128 = scmp.eq.s32.totalorder %s21, 0
      %p129 = por %p127, %p128
      %p130 = scmp.ne.s32.totalorder %s118, %s119
      %p131 = scmp.eq.s32.totalorder %s22, 3
      %p132 = por %p130, %p131
      %p134 = scmp.ne.s32.totalorder %s119, %s133
      %p135 = scmp.eq.s32.totalorder %s22, 0
      %p136 = por %p134, %p135
      %s138 = sadd.s32 %s137, 1
      %p141 = scmp.eq.s32.totalorder %s16, 3
      %p142 = scmp.ne.s32.totalorder %s137, %s139
      %p143 = scmp.eq.s32.totalorder %s16, 0
      %p144 = por %p142, %p143
      %p145 = scmp.ne.s32.totalorder %s137, %s139
      %p146 = scmp.eq.s32.totalorder %s21, 3
      %p147 = por %p145, %p146
      %p148 = scmp.ne.s32.totalorder %s139, %s140
      %p149 = scmp.eq.s32.totalorder %s21, 0
      %p150 = por %p148, %p149
      %p151 = scmp.ne.s32.totalorder %s139, %s140
      %p152 = scmp.eq.s32.totalorder %s22, 3
      %p153 = por %p151, %p152
      %p155 = scmp.ne.s32.totalorder %s140, %s154
      %p156 = scmp.eq.s32.totalorder %s22, 0
      %p157 = por %p155, %p156
      %s159 = sadd.s32 %s158, 1
      %p162 = scmp.eq.s32.totalorder %s16, 3
      %p163 = scmp.ne.s32.totalorder %s158, %s160
      %p164 = scmp.eq.s32.totalorder %s16, 0
      %p165 = por %p163, %p164
      %p166 = scmp.ne.s32.totalorder %s158, %s160
      %p167 = scmp.eq.s32.totalorder %s21, 3
      %p168 = por %p166, %p167
      %p169 = scmp.ne.s32.totalorder %s160, %s161
      %p170 = scmp.eq.s32.totalorder %s21, 0
      %p171 = por %p169, %p170
      %p172 = scmp.ne.s32.totalorder %s160, %s161
      %p173 = scmp.eq.s32.totalorder %s22, 3
      %p174 = por %p172, %p173
      %p176 = scmp.ne.s32.totalorder %s161, %s175
      %p177 = scmp.eq.s32.totalorder %s22, 0
      %p178 = por %p176, %p177
      %s180 = sadd.s32 %s179, 1
      %p183 = scmp.eq.s32.totalorder %s16, 3
      %p184 = scmp.ne.s32.totalorder %s179, %s181
      %p185 = scmp.eq.s32.totalorder %s16, 0
      %p186 = por %p184, %p185
      %p187 = scmp.ne.s32.totalorder %s179, %s181
      %p188 = scmp.eq.s32.totalorder %s21, 3
      %p189 = por %p187, %p188
      %p190 = scmp.ne.s32.totalorder %s181, %s182
      %p191 = scmp.eq.s32.totalorder %s21, 0
      %p192 = por %p190, %p191
      %p193 = scmp.ne.s32.totalorder %s181, %s182
      %p194 = scmp.eq.s32.totalorder %s22, 3
      %p195 = por %p193, %p194
      %p197 = scmp.ne.s32.totalorder %s182, %s196
      %p198 = scmp.eq.s32.totalorder %s22, 0
      %p199 = por %p197, %p198
      %s201 = sadd.s32 %s200, 1
      %p204 = scmp.eq.s32.totalorder %s16, 3
      %p205 = scmp.ne.s32.totalorder %s200, %s202
      %p206 = scmp.eq.s32.totalorder %s16, 0
      %p207 = por %p205, %p206
      %p208 = scmp.ne.s32.totalorder %s200, %s202
      %p209 = scmp.eq.s32.totalorder %s21, 3
      %p210 = por %p208, %p209
      %p211 = scmp.ne.s32.totalorder %s202, %s203
      %p212 = scmp.eq.s32.totalorder %s21, 0
      %p213 = por %p211, %p212
      %p214 = scmp.ne.s32.totalorder %s202, %s203
      %p215 = scmp.eq.s32.totalorder %s22, 3
      %p216 = por %p214, %p215
      %p218 = scmp.ne.s32.totalorder %s203, %s217
      %p219 = scmp.eq.s32.totalorder %s22, 0
      %p220 = por %p218, %p219
      %s222 = sadd.s32 %s221, 1
      %p225 = scmp.eq.s32.totalorder %s16, 3
      %p226 = scmp.ne.s32.totalorder %s221, %s223
      %p227 = scmp.eq.s32.totalorder %s16, 0
      %p228 = por %p226, %p227
      %p229 = scmp.ne.s32.totalorder %s221, %s223
      %p230 = scmp.eq.s32.totalorder %s21, 3
      %p231 = por %p229, %p230
      %p232 = scmp.ne.s32.totalorder %s223, %s224
      %p233 = scmp.eq.s32.totalorder %s21, 0
      %p234 = por %p232, %p233
      %p235 = scmp.ne.s32.totalorder %s223, %s224
      %p236 = scmp.eq.s32.totalorder %s22, 3
      %p237 = por %p235, %p236
      %p239 = scmp.ne.s32.totalorder %s224, %s238
      %p240 = scmp.eq.s32.totalorder %s22, 0
      %p241 = por %p239, %p240
      %s243 = sadd.s32 %s242, 1
      %p246 = scmp.eq.s32.totalorder %s16, 3
      %p247 = scmp.ne.s32.totalorder %s242, %s244
      %p248 = scmp.eq.s32.totalorder %s16, 0
      %p249 = por %p247, %p248
      %p250 = scmp.ne.s32.totalorder %s242, %s244
      %p251 = scmp.eq.s32.totalorder %s21, 3
      %p252 = por %p250, %p251
      %p253 = scmp.ne.s32.totalorder %s244, %s245
      %p254 = scmp.eq.s32.totalorder %s21, 0
      %p255 = por %p253, %p254
      %p256 = scmp.ne.s32.totalorder %s244, %s245
      %p257 = scmp.eq.s32.totalorder %s22, 3
      %p258 = por %p256, %p257
      %p260 = scmp.ne.s32.totalorder %s245, %s259
      %p261 = scmp.eq.s32.totalorder %s22, 0
      %p262 = por %p260, %p261
      %s263 = ssub.s32 %s23, %s35
      %p264 = scmp.eq.s32.totalorder %s263, 0
      %s266 = sadd.s32 %s265, 1
      %s267 = scalar_select %p264, %s265, %s266
      %p270 = pneg %p264
      %p271 = scmp.eq.s32.totalorder %s16, 3
      %p272 = por %p270, %p271
      %p273 = scmp.ne.s32.totalorder %s265, %s268
      %p274 = scmp.eq.s32.totalorder %s16, 0
      %p275 = por %p273, %p274
      %p276 = scmp.ne.s32.totalorder %s265, %s268
      %p277 = scmp.eq.s32.totalorder %s21, 3
      %p278 = por %p276, %p277
      %p279 = scmp.ne.s32.totalorder %s268, %s269
      %p280 = scmp.eq.s32.totalorder %s21, 0
      %p281 = por %p279, %p280
      %p282 = scmp.ne.s32.totalorder %s268, %s269
      %p283 = scmp.eq.s32.totalorder %s22, 3
      %p284 = por %p282, %p283
      %p286 = scmp.ne.s32.totalorder %s269, %s285
      %p287 = scmp.eq.s32.totalorder %s22, 0
      %p288 = por %p286, %p287
      %p289 = scmp.le.s32.totalorder 1, %s16
      %p290 = scmp.lt.s32.totalorder %s16, 5
      %p291 = pnand %p289, %p290
      %p292 = pneg %p291
      // Predicated region
      $region9: #{tpu_custom_call.1} parent=5 // pred_check
        _
      $region10: #{tpu_custom_call.1} parent=5 // pred_check_branch
        %294 = sbr.rel (%p291) target = $region12
      $region11: #{tpu_custom_call.1} parent=5 // pred_region
        %s295 = ssub.s32 %s16, 1
        // Predicated region
        $region13: #{tpu_custom_call.1} parent=11 // pred_check
          %p296 = pneg %p129
        $region14: #{tpu_custom_call.1} parent=11 // pred_check_branch
          %298 = sbr.rel (%p296) target = $region16
        $region15: #{tpu_custom_call.1} parent=11 // pred_region
          _
        $region16: #{tpu_custom_call.1} parent=11 // pred_fallthru
          _
        // Predicated region
        $region17: #{tpu_custom_call.1} parent=11 // pred_check
          %p299 = pneg %p150
        $region18: #{tpu_custom_call.1} parent=11 // pred_check_branch
          %301 = sbr.rel (%p299) target = $region20
        $region19: #{tpu_custom_call.1} parent=11 // pred_region
          _
        $region20: #{tpu_custom_call.1} parent=11 // pred_fallthru
          _
        // Predicated region
        $region21: #{tpu_custom_call.1} parent=11 // pred_check
          %p302 = pneg %p171
        $region22: #{tpu_custom_call.1} parent=11 // pred_check_branch
          %304 = sbr.rel (%p302) target = $region24
        $region23: #{tpu_custom_call.1} parent=11 // pred_region
          _
        $region24: #{tpu_custom_call.1} parent=11 // pred_fallthru
          _
        // Predicated region
        $region25: #{tpu_custom_call.1} parent=11 // pred_check
          %p305 = pneg %p192
        $region26: #{tpu_custom_call.1} parent=11 // pred_check_branch
          %307 = sbr.rel (%p305) target = $region28
        $region27: #{tpu_custom_call.1} parent=11 // pred_region
          _
        $region28: #{tpu_custom_call.1} parent=11 // pred_fallthru
          _
        // Predicated region
        $region29: #{tpu_custom_call.1} parent=11 // pred_check
          %p308 = pneg %p213
        $region30: #{tpu_custom_call.1} parent=11 // pred_check_branch
          %310 = sbr.rel (%p308) target = $region32
        $region31: #{tpu_custom_call.1} parent=11 // pred_region
          _
        $region32: #{tpu_custom_call.1} parent=11 // pred_fallthru
          _
        // Predicated region
        $region33: #{tpu_custom_call.1} parent=11 // pred_check
          %p311 = pneg %p234
        $region34: #{tpu_custom_call.1} parent=11 // pred_check_branch
          %313 = sbr.rel (%p311) target = $region36
        $region35: #{tpu_custom_call.1} parent=11 // pred_region
          _
        $region36: #{tpu_custom_call.1} parent=11 // pred_fallthru
          _
        // Predicated region
        $region37: #{tpu_custom_call.1} parent=11 // pred_check
          %p314 = pneg %p255
        $region38: #{tpu_custom_call.1} parent=11 // pred_check_branch
          %316 = sbr.rel (%p314) target = $region40
        $region39: #{tpu_custom_call.1} parent=11 // pred_region
          _
        $region40: #{tpu_custom_call.1} parent=11 // pred_fallthru
          _
      $region12: #{tpu_custom_call.1} parent=5 // pred_fallthru
        _
      %p317 = scmp.lt.s32.totalorder %s16, 4
      // Predicated region
      $region41: #{tpu_custom_call.1} parent=5 // pred_check
        %p318 = pneg %p317
      $region42: #{tpu_custom_call.1} parent=5 // pred_check_branch
        %320 = sbr.rel (%p318) target = $region44
      $region43: #{tpu_custom_call.1} parent=5 // pred_region
        // Predicated region
        $region45: #{tpu_custom_call.1} parent=43 // pred_check
          %p321 = pneg %p50
        $region46: #{tpu_custom_call.1} parent=43 // pred_check_branch
          %323 = sbr.rel (%p321) target = $region48
        $region47: #{tpu_custom_call.1} parent=43 // pred_region
          %s324 = sand.u32 %s40, 1
          %s325 = sand.u32 %s40, 1
          %s326 = smul.addr %s325, 8
          %s327 = scalar_lea.vmem [#allocation3], %s326
          %s328 = smul.u32 2, %s23
          %s329 = smul.addr %s328, 2
          %s330 = sadd.s32 %s24, %s329
          %s331 = smul.addr %s330, 4
          %s332 = scalar_lea.vmem %s0, %s331
          // Predicated region
          $region49: #{tpu_custom_call.1} parent=47 // pred_check
            _
          $region50: #{tpu_custom_call.1} parent=47 // pred_check_branch
            %334 = sbr.rel (0) target = $region52
          $region51: #{tpu_custom_call.1} parent=47 // pred_region
            // Predicated region
            $region53: #{tpu_custom_call.1} parent=51 // pred_check
              _
            $region54: #{tpu_custom_call.1} parent=51 // pred_check_branch
              %336 = sbr.rel target = $region56
            $region55: #{tpu_custom_call.1} parent=51 // pred_region
              // Predicated region
              $region68: #{tpu_custom_call.1} parent=55 // pred_check
                _
              $region69: #{tpu_custom_call.1} parent=55 // pred_check_branch
                %354 = sbr.rel (0) target = $region71
              $region70: #{tpu_custom_call.1} parent=55 // pred_region
                loop: start=0, step=1, limit=1
                $region72: #{tpu_custom_call.1} parent=70 // loop_pre_header
                  _
                $region73: #{tpu_custom_call.1} parent=70 // loop_header
                  %s356 = sphi 0, %s360
                  %p357 = scmp.ge.s32.totalorder %s356, 1
                  %s361 = sphi %s332, %s332
                  %s362 = sphi %s327, %s327
                $region74: #{tpu_custom_call.1} parent=70 // loop_header_branch
                  %359 = sbr.rel (%p357) target = $region78
                $region75: #{tpu_custom_call.1} parent=70 // loop_body
                  _
                $region76: #{tpu_custom_call.1} parent=70 // loop_footer
                  %s360 = sadd.s32 1, %s356
                $region77: #{tpu_custom_call.1} parent=70 // loop_footer_branch
                  %355 = sbr.rel target = $region73
                $region78: #{tpu_custom_call.1} parent=70 // loop_exit
                  _
                %s364 = ssub.s32 16, 1
                loop: start=0, step=1, limit=1
                $region79: #{tpu_custom_call.1} parent=70 // loop_pre_header
                  _
                $region80: #{tpu_custom_call.1} parent=70 // loop_header
                  %s366 = sphi 0, %s370
                  %p367 = scmp.ge.s32.totalorder %s366, 1
                  %s371 = sphi %s332, %s332
                  %s372 = sphi %s327, %s327
                $region81: #{tpu_custom_call.1} parent=70 // loop_header_branch
                  %369 = sbr.rel (%p367) target = $region85
                $region82: #{tpu_custom_call.1} parent=70 // loop_body
                  %v373 = vld [vmem:[%s371] sm:%s364]
                  %374 = vst [vmem:[%s372] sm:%s364] %v373
                  %v375 = vld [vmem:[%s371 + $0x8] sm:%s364]
                  %376 = vst [vmem:[%s372 + $0x4] sm:%s364] %v375
                $region83: #{tpu_custom_call.1} parent=70 // loop_footer
                  %s370 = sadd.s32 1, %s366
                $region84: #{tpu_custom_call.1} parent=70 // loop_footer_branch
                  %365 = sbr.rel target = $region80
                $region85: #{tpu_custom_call.1} parent=70 // loop_exit
                  _
              $region71: #{tpu_custom_call.1} parent=55 // pred_fallthru
                _
            $region56: #{tpu_custom_call.1} parent=51 // pred_fallthru
              _
            // Predicated region
            $region57: #{tpu_custom_call.1} parent=51 // pred_check
              _
            $region58: #{tpu_custom_call.1} parent=51 // pred_check_branch
              %338 = sbr.rel (0) target = $region60
            $region59: #{tpu_custom_call.1} parent=51 // pred_region
              %s340 = ssub.s32 16, 1
              loop: start=0, step=1, limit=1
              $region61: #{tpu_custom_call.1} parent=59 // loop_pre_header
                _
              $region62: #{tpu_custom_call.1} parent=59 // loop_header
                %s342 = sphi 0, %s346
                %p343 = scmp.ge.s32.totalorder %s342, 1
                %s347 = sphi %s332, %s332
                %s348 = sphi %s327, %s327
              $region63: #{tpu_custom_call.1} parent=59 // loop_header_branch
                %345 = sbr.rel (%p343) target = $region67
              $region64: #{tpu_custom_call.1} parent=59 // loop_body
                %v349 = vld [vmem:[%s347] sm:%s340]
                %350 = vst [vmem:[%s348] sm:%s340] %v349
                %v351 = vld [vmem:[%s347 + $0x8] sm:%s340]
                %352 = vst [vmem:[%s348 + $0x4] sm:%s340] %v351
              $region65: #{tpu_custom_call.1} parent=59 // loop_footer
                %s346 = sadd.s32 1, %s342
              $region66: #{tpu_custom_call.1} parent=59 // loop_footer_branch
                %341 = sbr.rel target = $region62
              $region67: #{tpu_custom_call.1} parent=59 // loop_exit
                _
            $region60: #{tpu_custom_call.1} parent=51 // pred_fallthru
              _
          $region52: #{tpu_custom_call.1} parent=47 // pred_fallthru
            _
          %377 = vnop
        $region48: #{tpu_custom_call.1} parent=43 // pred_fallthru
          _
        // Predicated region
        $region86: #{tpu_custom_call.1} parent=43 // pred_check
          %p378 = pneg %p76
        $region87: #{tpu_custom_call.1} parent=43 // pred_check_branch
          %380 = sbr.rel (%p378) target = $region89
        $region88: #{tpu_custom_call.1} parent=43 // pred_region
          %s381 = smul.u32 2, %s23
          %p382 = scmp.lt.s32.totalorder %s381, 3
          %s383 = scalar_select %p382, %s381, 3
          %s384 = smul.addr %s383, 4
          %s385 = scalar_lea.vmem %s1, %s384
          %s386 = smul.u32 2, %s23
        $region89: #{tpu_custom_call.1} parent=43 // pred_fallthru
          _
        // Predicated region
        $region90: #{tpu_custom_call.1} parent=43 // pred_check
          %p387 = pneg %p102
        $region91: #{tpu_custom_call.1} parent=43 // pred_check_branch
          %389 = sbr.rel (%p387) target = $region93
        $region92: #{tpu_custom_call.1} parent=43 // pred_region
          %s390 = smul.u32 16, %s24
          %p391 = scmp.lt.s32.totalorder %s390, 31
          %s392 = scalar_select %p391, %s390, 31
          %s393 = smul.addr %s392, 4
          %s394 = scalar_lea.vmem %s2, %s393
          %s395 = smul.u32 16, %s24
        $region93: #{tpu_custom_call.1} parent=43 // pred_fallthru
          _
      $region44: #{tpu_custom_call.1} parent=5 // pred_fallthru
        _
      %p396 = scmp.le.s32.totalorder 1, %s16
      %p397 = scmp.lt.s32.totalorder %s16, 5
      %p398 = pnand %p396, %p397
      %p399 = pneg %p398
      // Predicated region
      $region94: #{tpu_custom_call.1} parent=5 // pred_check
        _
      $region95: #{tpu_custom_call.1} parent=5 // pred_check_branch
        %401 = sbr.rel (%p398) target = $region97
      $region96: #{tpu_custom_call.1} parent=5 // pred_region
        %s402 = ssub.s32 %s16, 1
        %s403 = sand.u32 %s43, 1
        %s404 = sand.u32 %s43, 1
        %s405 = smul.addr %s404, 8
        %s406 = scalar_lea.vmem [#allocation3], %s405
        // Predicated region
        $region98: #{tpu_custom_call.1} parent=96 // pred_check
          %p407 = pneg %p56
        $region99: #{tpu_custom_call.1} parent=96 // pred_check_branch
          %409 = sbr.rel (%p407) target = $region101
        $region100: #{tpu_custom_call.1} parent=96 // pred_region
          _
        $region101: #{tpu_custom_call.1} parent=96 // pred_fallthru
          _
        %s410 = sand.u32 %s43, 1
        %s411 = sand.u32 %s43, 1
        %s412 = smul.addr %s411, 8
        %s413 = scalar_lea.vmem [#allocation3], %s412
        %p414 = pneg %p56
        %p415 = pneg %p53
        %s416 = smul.u32 2, %s25
        %p417 = scmp.lt.s32.totalorder %s416, 3
        %s418 = scalar_select %p417, %s416, 3
        %s419 = smul.addr %s418, 4
        %s420 = scalar_lea.vmem %s1, %s419
        %p421 = pneg %p82
        %p422 = pneg %p79
        %s423 = smul.u32 16, %s26
        %p424 = scmp.lt.s32.totalorder %s423, 31
        %s425 = scalar_select %p424, %s423, 31
        %s426 = smul.addr %s425, 4
        %s427 = scalar_lea.vmem %s2, %s426
        %p428 = pneg %p108
        %p429 = pneg %p105
        %p430 = pneg %p129
        %p431 = pneg %p126
        %p432 = pneg %p150
        %p433 = pneg %p147
        %p434 = pneg %p171
        %p435 = pneg %p168
        %p436 = pneg %p192
        %p437 = pneg %p189
        %p438 = pneg %p213
        %p439 = pneg %p210
        %p440 = pneg %p234
        %p441 = pneg %p231
        %p442 = pneg %p255
        %p443 = pneg %p252
        %p444 = pneg %p281
        %p445 = pneg %p278
        %s446 = smul.u32 2, %s25
        %p447 = scmp.lt.s32.totalorder %s446, 3
        %s448 = scalar_select %p447, %s446, 3
        %s449 = smul.addr %s448, 8
        %s450 = scalar_lea.vmem %s10, %s449
        %s451 = smul.u32 2, %s25
        %s452 = smul.u32 2, %s25
        %p453 = scmp.lt.s32.totalorder %s452, 3
        %s454 = scalar_select %p453, %s452, 3
        %s455 = smul.addr %s454, 4
        %s456 = scalar_lea.vmem %s1, %s455
        %s457 = smul.u32 2, %s25
        %s458 = smul.u32 16, %s26
        %p459 = scmp.lt.s32.totalorder %s458, 31
        %s460 = scalar_select %p459, %s458, 31
        %s461 = smul.addr %s460, 4
        %s462 = scalar_lea.vmem %s2, %s461
        %s463 = smul.u32 16, %s26
        %s464 = smul.u32 2, %s25
        %p465 = scmp.lt.s32.totalorder %s464, 3
        %s466 = scalar_select %p465, %s464, 3
        %s467 = smul.addr %s466, 8
        %s468 = scalar_lea.vmem %s10, %s467
        %s469 = smul.u32 2, %s25
        %p471 = scmp.eq.s32.totalorder %s26, 0
        // Predicated region
        $region102: #{tpu_custom_call.1} parent=96 // pred_check
          %p472 = pneg %p471
        $region103: #{tpu_custom_call.1} parent=96 // pred_check_branch
          %474 = sbr.rel (%p472) target = $region105
        $region104: #{tpu_custom_call.1} parent=96 // pred_region
          %vm475 = vcmask 261120
          %476 = vst.msk [vmem:[#allocation2] sm:$0xff] %vm475, 0.0
          %477 = vst.msk [vmem:[#allocation2 + $0x8] sm:$0xff] %vm475, 0.0
        $region105: #{tpu_custom_call.1} parent=96 // pred_fallthru
          _
        %v478 = vld [vmem:[#allocation2] sm:$0xff]
        %v479 = vld [vmem:[#allocation2 + $0x8] sm:$0xff]
        %v480 = vld [vmem:[%s406] sm:$0xf]
        %v481 = vld [vmem:[%s406 + $0x4] sm:$0xf]
        %v482 = vld [vmem:[%s462] sm:$0xf]
        %v483 = vld [vmem:[%s462 + $0x4] sm:$0xf]
        %v484 = vld [vmem:[%s462 + $0x8] sm:$0xf]
        %v485 = vld [vmem:[%s462 + $0xc] sm:$0xf]
        %v486 = vld [vmem:[%s462 + $0x10] sm:$0xf]
        %v487 = vld [vmem:[%s462 + $0x14] sm:$0xf]
        %v488 = vld [vmem:[%s462 + $0x18] sm:$0xf]
        %v489 = vld [vmem:[%s462 + $0x1c] sm:$0xf]
        %v490 = vld [vmem:[%s462 + $0x20] sm:$0xf]
        %v491 = vld [vmem:[%s462 + $0x24] sm:$0xf]
        %v492 = vld [vmem:[%s462 + $0x28] sm:$0xf]
        %v493 = vld [vmem:[%s462 + $0x2c] sm:$0xf]
        %v494 = vld [vmem:[%s462 + $0x30] sm:$0xf]
        %v495 = vld [vmem:[%s462 + $0x34] sm:$0xf]
        %v496 = vld [vmem:[%s462 + $0x38] sm:$0xf]
        %v497 = vld [vmem:[%s462 + $0x3c] sm:$0xf]
        %v500 = vunpack.c.l.b16 %v480
        %v501 = vunpack.c.l.b16 %v481
        %v502 = vpack.c.b16 %v501, %v500
        %v520 = vunpack.c.l.b16 %v482
        %v521 = vunpack.c.l.b16 %v483
        %v522 = vunpack.c.l.b16 %v484
        %v523 = vunpack.c.l.b16 %v485
        %v524 = vunpack.c.l.b16 %v486
        %v525 = vunpack.c.l.b16 %v487
        %v526 = vunpack.c.l.b16 %v488
        %v527 = vunpack.c.l.b16 %v489
        %v528 = vunpack.c.l.b16 %v490
        %v529 = vunpack.c.l.b16 %v491
        %v530 = vunpack.c.l.b16 %v492
        %v531 = vunpack.c.l.b16 %v493
        %v532 = vunpack.c.l.b16 %v494
        %v533 = vunpack.c.l.b16 %v495
        %v534 = vunpack.c.l.b16 %v496
        %v535 = vunpack.c.l.b16 %v497
        %v536 = vpack.c.b16 %v521, %v520
        %v537 = vpack.c.b16 %v523, %v522
        %v538 = vpack.c.b16 %v525, %v524
        %v539 = vpack.c.b16 %v527, %v526
        %v540 = vpack.c.b16 %v529, %v528
        %v541 = vpack.c.b16 %v531, %v530
        %v542 = vpack.c.b16 %v533, %v532
        %v543 = vpack.c.b16 %v535, %v534
        %552 = vmatpush.bf16.msra.mxu0 %v543
        %553 = vmatpush.bf16.msra.mxu0 %v542
        %554 = vmatpush.bf16.msra.mxu0 %v541
        %555 = vmatpush.bf16.msra.mxu0 %v540
        %556 = vmatpush.bf16.msra.mxu0 %v539
        %557 = vmatpush.bf16.msra.mxu0 %v538
        %558 = vmatpush.bf16.msra.mxu0 %v537
        %559 = vmatpush.bf16.msra.mxu0 %v536
        %560 = vmatmul.bf16.gmra.mxu0 %v502
        %v561 = vpop.f32.mrf.mxu0
        %v562 = vadd.f32 0.0, %v561
        %v563 = vpop.f32.mrf.mxu0
        %v564 = vadd.f32 0.0, %v563
        %565 = vdwg.mxu0
        %v566 = vadd.f32 %v478, %v562
        %v567 = vadd.f32 %v479, %v564
        %vm568 = vcmask 261120
        %569 = vst.msk [vmem:[#allocation2] sm:$0xff] %vm568, %v566
        %570 = vst.msk [vmem:[#allocation2 + $0x8] sm:$0xff] %vm568, %v567
        %p571 = scmp.eq.s32.totalorder %s26, 1
        // Predicated region
        $region106: #{tpu_custom_call.1} parent=96 // pred_check
          %p572 = pneg %p571
        $region107: #{tpu_custom_call.1} parent=96 // pred_check_branch
          %574 = sbr.rel (%p572) target = $region109
        $region108: #{tpu_custom_call.1} parent=96 // pred_region
          %v575 = vld [vmem:[%s9] sm:$0x1]
          %v576 = vld [vmem:[%s9 + $0x1] sm:$0x1]
          %v577 = vld [vmem:[%s9 + $0x2] sm:$0x1]
          %v578 = vld [vmem:[%s9 + $0x3] sm:$0x1]
          %v579 = vld [vmem:[%s9 + $0x4] sm:$0x1]
          %v580 = vld [vmem:[%s9 + $0x5] sm:$0x1]
          %v581 = vld [vmem:[#allocation2] sm:$0xff]
          %v582 = vld [vmem:[#allocation2 + $0x8] sm:$0xff]
          %v583 = vperm.slane %v575, 0
          %v584 = vadd.f32 %v581, %v583
          %v585 = vadd.f32 %v582, %v583
          %v586 = vsel %vm568, %v584, 0.0
          %587 = vadd.xlane.f32.xlu0 %v586
          %v588 = vpop.xlane.xlu0 %587
          %v589 = vsel %vm568, %v585, 0.0
          %590 = vadd.xlane.f32.xlu0 %v589
          %v591 = vpop.xlane.xlu0 %590
          %v592 = vrcp.pop 32.0
          %v593 = vmul.f32 32.0, %v592
          %v594 = vsub.f32 1.0, %v593
          %v595 = vmul.f32 %v592, %v594
          %v596 = vadd.f32 %v592, %v595
          %vm597 = vweird.f32 %v592
          %v598 = vsel %vm597, %v592, %v596
          %v599 = vmul.f32 %v588, %v598
          %v600 = vmul.f32 %v591, %v598
          %v601 = vsub.f32 %v584, %v599
          %v602 = vsub.f32 %v585, %v600
          %v603 = vmul.f32 %v601, %v601
          %v604 = vmul.f32 %v602, %v602
          %v605 = vsel %vm568, %v603, 0.0
          %606 = vadd.xlane.f32.xlu0 %v605
          %v607 = vpop.xlane.xlu0 %606
          %v608 = vsel %vm568, %v604, 0.0
          %609 = vadd.xlane.f32.xlu0 %v608
          %v610 = vpop.xlane.xlu0 %609
          %v611 = vmul.f32 %v607, %v598
          %v612 = vmul.f32 %v610, %v598
          %v613 = vadd.f32 %v611, 1e-05
          %v614 = vadd.f32 %v612, 1e-05
          %v615 = vrsqrt.pop %v613
          %v616 = vmul.f32 %v615, %v613
          %v617 = vmul.f32 %v616, %v615
          %v618 = vmul.f32 0.5, %v617
          %v619 = vsub.f32 1.5, %v618
          %v620 = vmul.f32 %v615, %v619
          %vm621 = vweird.f32 %v613
          %vm622 = vweird.f32 %v615
          %vm623 = vmor %vm621, %vm622
          %v624 = vsel %vm623, %v615, %v620
          %v625 = vrsqrt.pop %v614
          %v626 = vmul.f32 %v625, %v614
          %v627 = vmul.f32 %v626, %v625
          %v628 = vmul.f32 0.5, %v627
          %v629 = vsub.f32 1.5, %v628
          %v630 = vmul.f32 %v625, %v629
          %vm631 = vweird.f32 %v614
          %vm632 = vweird.f32 %v625
          %vm633 = vmor %vm631, %vm632
          %v634 = vsel %vm633, %v625, %v630
          %v635 = vmul.f32 %v601, %v624
          %v636 = vmul.f32 %v602, %v634
          %v637 = vperm.slane %v576, 0
          %v638 = vmul.f32 %v635, %v637
          %v639 = vmul.f32 %v636, %v637
          %v640 = vperm.slane %v577, 0
          %v641 = vadd.f32 %v638, %v640
          %v642 = vadd.f32 %v639, %v640
          %v643 = vtanh.pop %v641
          %v644 = vtanh.pop %v642
          %v645 = vpack.c.bf16 %v644, %v643
          %v646 = vld [vmem:[%s456] sm:$0xf]
          %v647 = vld [vmem:[%s456 + $0x4] sm:$0xf]
          %v648 = vld [vmem:[%s3] sm:$0xf]
          %v649 = vld [vmem:[%s3 + $0x4] sm:$0xf]
          %v650 = vld [vmem:[%s3 + $0x8] sm:$0xf]
          %v651 = vld [vmem:[%s3 + $0xc] sm:$0xf]
          %v652 = vld [vmem:[%s4] sm:$0x3]
          %v655 = vunpack.c.l.b16 %v646
          %v656 = vunpack.c.l.b16 %v647
          %v657 = vpack.c.b16 %v656, %v655
          %vm658 = vcmask 31744
          %v660 = vsel %vm658, %v657, 0
          %vm662 = vcmask 1041408
          %v664 = vsel %vm662, %v652, 0
          %666 = vmatpush.bf16.msra.mxu0 0
          %667 = vmatpush.bf16.msra.mxu0 0
          %668 = vmatpush.bf16.msra.mxu0 0
          %669 = vmatpush.bf16.msra.mxu0 0
          %670 = vmatpush.bf16.msra.mxu0 0
          %671 = vmatpush.bf16.msra.mxu0 0
          %672 = vmatpush.bf16.msra.mxu0 0
          %673 = vmatpush.bf16.msra.mxu0 %v664
          %674 = vmatmul.bf16.gmra.mxu0 %v660
          %v675 = vpop.f32.mrf.mxu0
          %v676 = vadd.f32 0.0, %v675
          %v677 = vpop.f32.mrf.mxu0
          %v678 = vadd.f32 0.0, %v677
          %679 = vdwg.mxu0
          %v684 = vunpack.c.l.b16 %v648
          %v685 = vunpack.c.l.b16 %v649
          %v686 = vunpack.c.l.b16 %v650
          %v687 = vunpack.c.l.b16 %v651
          %v688 = vpack.c.b16 %v685, %v684
          %v689 = vpack.c.b16 %v687, %v686
          %v693 = vsel %vm568, %v645, 0
          %695 = vmatpush.bf16.msra.mxu0 0
          %696 = vmatpush.bf16.msra.mxu0 0
          %697 = vmatpush.bf16.msra.mxu0 0
          %698 = vmatpush.bf16.msra.mxu0 0
          %699 = vmatpush.bf16.msra.mxu0 0
          %700 = vmatpush.bf16.msra.mxu0 0
          %701 = vmatpush.bf16.msra.mxu0 %v689
          %702 = vmatpush.bf16.msra.mxu0 %v688
          %703 = vmatmul.bf16.gmra.mxu0 %v693
          %v704 = vpop.f32.mrf.mxu0
          %v705 = vadd.f32 %v676, %v704
          %v706 = vpop.f32.mrf.mxu0
          %v707 = vadd.f32 %v678, %v706
          %708 = vdwg.mxu0
          %v709 = vperm.slane %v578, 0
          %v710 = vadd.f32 %v705, %v709
          %v711 = vadd.f32 %v707, %v709
          %v712 = vmax.f32 %v710, 0.0
          %v713 = vmax.f32 %v711, 0.0
          %v714 = vpack.c.bf16 %v713, %v712
          %v715 = vld [vmem:[%s5] sm:$0xf]
          %v716 = vld [vmem:[%s5 + $0x4] sm:$0xf]
          %v717 = vld [vmem:[%s5 + $0x8] sm:$0xf]
          %v718 = vld [vmem:[%s5 + $0xc] sm:$0xf]
          %v719 = vperm.slane %v579, 0
          %v724 = vunpack.c.l.b16 %v715
          %v725 = vunpack.c.l.b16 %v716
          %v726 = vunpack.c.l.b16 %v717
          %v727 = vunpack.c.l.b16 %v718
          %v728 = vpack.c.b16 %v725, %v724
          %v729 = vpack.c.b16 %v727, %v726
          %v733 = vsel %vm568, %v714, 0
          %735 = vmatpush.bf16.msra.mxu0 0
          %736 = vmatpush.bf16.msra.mxu0 0
          %737 = vmatpush.bf16.msra.mxu0 0
          %738 = vmatpush.bf16.msra.mxu0 0
          %739 = vmatpush.bf16.msra.mxu0 0
          %740 = vmatpush.bf16.msra.mxu0 0
          %741 = vmatpush.bf16.msra.mxu0 %v729
          %742 = vmatpush.bf16.msra.mxu0 %v728
          %743 = vmatmul.bf16.gmra.mxu0 %v733
          %v744 = vpop.f32.mrf.mxu0
          %v745 = vadd.f32 %v719, %v744
          %v746 = vpop.f32.mrf.mxu0
          %v747 = vadd.f32 %v719, %v746
          %748 = vdwg.mxu0
          %v749 = vmax.f32 %v745, 0.0
          %v750 = vmax.f32 %v747, 0.0
          %v751 = vld [vmem:[%s6] sm:$0xf]
          %v752 = vld [vmem:[%s6 + $0x4] sm:$0xf]
          %v753 = vld [vmem:[%s6 + $0x8] sm:$0xf]
          %v754 = vld [vmem:[%s6 + $0xc] sm:$0xf]
          %756 = vrot.lane.b32.xlu0 %v714, 96
          %v757 = vpop.permute.xlu0 %756
          %v762 = vunpack.c.l.b16 %v751
          %v763 = vunpack.c.l.b16 %v752
          %v764 = vunpack.c.l.b16 %v753
          %v765 = vunpack.c.l.b16 %v754
          %v766 = vpack.c.b16 %v763, %v762
          %v767 = vpack.c.b16 %v765, %v764
          %771 = vrot.lane.b32.xlu0 %v719, 96
          %v772 = vpop.permute.xlu0 %771
          %v775 = vsel %vm568, %v757, 0
          %777 = vmatpush.bf16.msra.mxu0 0
          %778 = vmatpush.bf16.msra.mxu0 0
          %779 = vmatpush.bf16.msra.mxu0 0
          %780 = vmatpush.bf16.msra.mxu0 0
          %781 = vmatpush.bf16.msra.mxu0 0
          %782 = vmatpush.bf16.msra.mxu0 0
          %783 = vmatpush.bf16.msra.mxu0 %v767
          %784 = vmatpush.bf16.msra.mxu0 %v766
          %785 = vmatmul.bf16.gmra.mxu0 %v775
          %v786 = vpop.f32.mrf.mxu0
          %v787 = vadd.f32 %v772, %v786
          %v788 = vpop.f32.mrf.mxu0
          %v789 = vadd.f32 %v772, %v788
          %790 = vdwg.mxu0
          %v791 = vmax.f32 %v787, 0.0
          %v792 = vmax.f32 %v789, 0.0
          %v793 = vpack.c.bf16 %v750, %v749
          %v794 = vld [vmem:[%s7] sm:$0xf]
          %v795 = vld [vmem:[%s7 + $0x4] sm:$0xf]
          %v796 = vld [vmem:[%s7 + $0x8] sm:$0xf]
          %v797 = vld [vmem:[%s7 + $0xc] sm:$0xf]
          %v798 = vperm.slane %v580, 0
          %v803 = vunpack.c.l.b16 %v794
          %v804 = vunpack.c.l.b16 %v795
          %v805 = vunpack.c.l.b16 %v796
          %v806 = vunpack.c.l.b16 %v797
          %v807 = vpack.c.b16 %v804, %v803
          %v808 = vpack.c.b16 %v806, %v805
          %v812 = vsel %vm568, %v793, 0
          %814 = vmatpush.bf16.msra.mxu0 0
          %815 = vmatpush.bf16.msra.mxu0 0
          %816 = vmatpush.bf16.msra.mxu0 0
          %817 = vmatpush.bf16.msra.mxu0 0
          %818 = vmatpush.bf16.msra.mxu0 0
          %819 = vmatpush.bf16.msra.mxu0 0
          %820 = vmatpush.bf16.msra.mxu0 %v808
          %821 = vmatpush.bf16.msra.mxu0 %v807
          %822 = vmatmul.bf16.gmra.mxu0 %v812
          %v823 = vpop.f32.mrf.mxu0
          %v824 = vadd.f32 %v798, %v823
          %v825 = vpop.f32.mrf.mxu0
          %v826 = vadd.f32 %v798, %v825
          %827 = vdwg.mxu0
          %v828 = vpack.c.bf16 %v792, %v791
          %v829 = vld [vmem:[%s8] sm:$0xf]
          %v830 = vld [vmem:[%s8 + $0x4] sm:$0xf]
          %v831 = vld [vmem:[%s8 + $0x8] sm:$0xf]
          %v832 = vld [vmem:[%s8 + $0xc] sm:$0xf]
          %v837 = vunpack.c.l.b16 %v829
          %v838 = vunpack.c.l.b16 %v830
          %v839 = vunpack.c.l.b16 %v831
          %v840 = vunpack.c.l.b16 %v832
          %v841 = vpack.c.b16 %v838, %v837
          %v842 = vpack.c.b16 %v840, %v839
          %846 = vrot.lane.b32.xlu0 %v798, 127
          %v847 = vpop.permute.xlu0 %846
          %v850 = vsel %vm568, %v828, 0
          %852 = vmatpush.bf16.msra.mxu0 0
          %853 = vmatpush.bf16.msra.mxu0 0
          %854 = vmatpush.bf16.msra.mxu0 0
          %855 = vmatpush.bf16.msra.mxu0 0
          %856 = vmatpush.bf16.msra.mxu0 0
          %857 = vmatpush.bf16.msra.mxu0 0
          %858 = vmatpush.bf16.msra.mxu0 %v842
          %859 = vmatpush.bf16.msra.mxu0 %v841
          %860 = vmatmul.bf16.gmra.mxu0 %v850
          %v861 = vpop.f32.mrf.mxu0
          %v862 = vadd.f32 %v847, %v861
          %v863 = vpop.f32.mrf.mxu0
          %v864 = vadd.f32 %v847, %v863
          %865 = vdwg.mxu0
          %868 = vrot.lane.b32.xlu0 %v862, 1
          %v869 = vpop.permute.xlu0 %868
          %870 = vrot.lane.b32.xlu0 %v864, 1
          %v871 = vpop.permute.xlu0 %870
          %vm874 = vcmask 7168
          %v875 = vsel %vm874, %v824, %v869
          %v876 = vsel %vm874, %v826, %v871
          %vm877 = vcmask 15360
          %878 = vst.msk [vmem:[%s468] sm:$0xff] %vm877, %v875
          %879 = vst.msk [vmem:[%s468 + $0x8] sm:$0xff] %vm877, %v876
        $region109: #{tpu_custom_call.1} parent=96 // pred_fallthru
          _
        %s880 = smul.u32 2, %s25
        %p881 = scmp.lt.s32.totalorder %s880, 3
        %s882 = scalar_select %p881, %s880, 3
        %s883 = smul.addr %s882, 8
        %s884 = scalar_lea.vmem %s10, %s883
        // Predicated region
        $region110: #{tpu_custom_call.1} parent=96 // pred_check
          %p885 = pneg %p278
        $region111: #{tpu_custom_call.1} parent=96 // pred_check_branch
          %887 = sbr.rel (%p885) target = $region113
        $region112: #{tpu_custom_call.1} parent=96 // pred_region
          %s888 = smul.u32 2, %s25
        $region113: #{tpu_custom_call.1} parent=96 // pred_fallthru
          _
      $region97: #{tpu_custom_call.1} parent=5 // pred_fallthru
        _
      %p889 = scmp.le.s32.totalorder 2, %s16
      // Predicated region
      $region114: #{tpu_custom_call.1} parent=5 // pred_check
        %p890 = pneg %p889
      $region115: #{tpu_custom_call.1} parent=5 // pred_check_branch
        %892 = sbr.rel (%p890) target = $region117
      $region116: #{tpu_custom_call.1} parent=5 // pred_region
        %s893 = ssub.s32 %s16, 2
        // Predicated region
        $region118: #{tpu_custom_call.1} parent=116 // pred_check
          %p894 = pneg %p284
        $region119: #{tpu_custom_call.1} parent=116 // pred_check_branch
          %896 = sbr.rel (%p894) target = $region121
        $region120: #{tpu_custom_call.1} parent=116 // pred_region
          %s897 = smul.u32 2, %s27
          %p898 = scmp.lt.s32.totalorder %s897, 3
          %s899 = scalar_select %p898, %s897, 3
          %s900 = smul.addr %s899, 8
          %s901 = scalar_lea.vmem %s10, %s900
        $region121: #{tpu_custom_call.1} parent=116 // pred_fallthru
          _
      $region117: #{tpu_custom_call.1} parent=5 // pred_fallthru
        _
    $region6: #{tpu_custom_call.1} parent=1 // loop_footer
      %s20 = sadd.s32 1, %s16
    $region7: #{tpu_custom_call.1} parent=1 // loop_footer_branch
      %15 = sbr.rel target = $region3
    $region8: #{tpu_custom_call.1} parent=1 // loop_exit
      _

</llo_original>
